<compile_context>
chip_gen: v7x
topology: tpu7x:2x2x1
jax: 0.10.0
libtpu: 0.0.40
codegen_flags: <defaults>
</compile_context>

<pallas_src>
import functools

import jax
import jax.numpy as jnp
from jax.experimental import pallas as pl
from jax.experimental.pallas import tpu as pltpu

_LANE = 128
_SUBLANE = 8
_TINY_BYTES = 256 * 1024         # below this, XLA's native transpose wins
_STEP_PAYLOAD_TARGET = 4 << 20   # aim for >= this much real data per grid step
_STEP_VMEM_BUDGET = 6 << 20      # padded (in + out + temp) bytes per step, single copy
_MAX_BATCH_FOLD = 16             # max batch elements folded (unrolled) per grid step
_SPLIT_BYTES = 1 << 20           # force >=2 grid steps above this size (v7x: 2 TCs)


def _cdiv(a, b):
    return -(-a // b)


def _round_up(v, m):
    return _cdiv(v, m) * m


def _largest_divisor_leq(n, k):
    k = max(1, min(n, k))
    for d in range(k, 0, -1):
        if n % d == 0:
            return d
    return 1


def _vmem_limit(step_bytes):
    # Double-buffered tiles + generous headroom for relayout temporaries.
    need = 2 * step_bytes
    return int(min(48 << 20, max(16 << 20, need + max(need, 4 << 20))))


# ----------------------------------------------------------------------------
# Tile planning
# ----------------------------------------------------------------------------
def _plan_rowmajor(nb, a, b, itemsize):
    """Plan for the plain (A, B) -> (B, A) transpose. Returns (b_tile, ta, tb, vmem)."""

    def tile_bytes(ta, tb):
        t_in = _round_up(ta, _SUBLANE) * _round_up(tb, _LANE) * itemsize
        t_out = _round_up(tb, _SUBLANE) * _round_up(ta, _LANE) * itemsize
        return t_in + t_out

    ta, tb = a, b
    # Shrink tb (input lane dim) first; tiled tb must be a multiple of 128.
    if tile_bytes(ta, tb) > _STEP_VMEM_BUDGET and b > _LANE:
        denom = (_round_up(a, _SUBLANE) + _round_up(a, _LANE)) * itemsize
        tb = max(_LANE, min((b // _LANE) * _LANE,
                            (_STEP_VMEM_BUDGET // denom) // _LANE * _LANE))
    # Then shrink ta if needed; tiled ta must be a multiple of 128 (it becomes
    # the output's lane dim).
    if tile_bytes(ta, tb) > _STEP_VMEM_BUDGET and a > _LANE:
        denom = (_round_up(tb, _LANE) + _round_up(tb, _SUBLANE)) * itemsize
        ta = max(_LANE, min((a // _LANE) * _LANE,
                            (_STEP_VMEM_BUDGET // denom) // _LANE * _LANE))

    # Fold batches when a whole per-batch slab is small (amortize step cost).
    b_tile = 1
    if ta == a and tb == b:
        want = max(1, _STEP_PAYLOAD_TARGET // max(1, a * b * itemsize))
        cap = max(1, _STEP_VMEM_BUDGET // max(1, tile_bytes(a, b)))
        b_tile = _largest_divisor_leq(nb, min(nb, _MAX_BATCH_FOLD, want, cap))

    # Never collapse the whole problem into a single grid step (v7x has 2 TCs).
    steps = (nb // b_tile) * _cdiv(a, ta) * _cdiv(b, tb)
    if steps == 1 and nb * a * b * itemsize >= _SPLIT_BYTES:
        if nb >= 2:
            b_tile = _largest_divisor_leq(nb, max(1, b_tile // 2))
        elif b >= 2 * _LANE:
            tb = min(tb, _round_up(_cdiv(b, 2), _LANE))
        elif a >= 2 * _LANE:
            ta = min(ta, _round_up(_cdiv(a, 2), _LANE))

    return b_tile, ta, tb, _vmem_limit(b_tile * tile_bytes(ta, tb))


def _plan_flat(nb, a, b, itemsize):
    """Plan for the lane-dense flat-output variant (a < 128, b % 128 == 0).

    Returns (b_tile, tb, vmem) or None when no legal tiling exists.
    """
    g_full = b // _LANE

    def tile_bytes(tb):
        g = tb // _LANE
        t_in = _round_up(a, _SUBLANE) * tb * itemsize
        t_out = _round_up(g, _SUBLANE) * (_LANE * a) * itemsize
        t_tmp = _round_up(tb, _SUBLANE) * _round_up(a, _LANE) * itemsize  # (TB, A) intermediate
        return t_in + t_out + t_tmp

    tb = b
    if tile_bytes(tb) > _STEP_VMEM_BUDGET:
        if g_full < _SUBLANE:
            return None
        # Tiled blocks must keep G = tb/128 a multiple of 8 so the output
        # BlockSpec's second-to-last dim stays (8, 128)-legal.
        per_group = (_round_up(a, _SUBLANE) + a + _round_up(a, _LANE)) * _LANE * itemsize
        g_tile = (_STEP_VMEM_BUDGET // per_group) // _SUBLANE * _SUBLANE
        if g_tile < _SUBLANE:
            return None
        tb = min(g_tile, g_full) * _LANE

    b_tile = 1
    if tb == b:
        want = max(1, _STEP_PAYLOAD_TARGET // max(1, a * b * itemsize))
        cap = max(1, _STEP_VMEM_BUDGET // max(1, tile_bytes(b)))
        b_tile = _largest_divisor_leq(nb, min(nb, _MAX_BATCH_FOLD, want, cap))

    steps = (nb // b_tile) * _cdiv(b, tb)
    if steps == 1 and nb * a * b * itemsize >= _SPLIT_BYTES:
        if nb >= 2:
            b_tile = _largest_divisor_leq(nb, max(1, b_tile // 2))
        elif b >= 2 * _SUBLANE * _LANE:
            tb = _round_up(_cdiv(b, 2), _SUBLANE * _LANE)

    return b_tile, tb, _vmem_limit(b_tile * tile_bytes(tb))


# ----------------------------------------------------------------------------
# Kernel builders (cached per static signature -> compile once per shape)
# ----------------------------------------------------------------------------
@functools.lru_cache(maxsize=None)
def _build_rowmajor(nb, a, b, dtype_name, b_tile, ta, tb, vmem_limit):
    dtype = jnp.dtype(dtype_name)
    grid = (nb // b_tile, _cdiv(a, ta), _cdiv(b, tb))

    def kernel(x_ref, o_ref):
        # Unrolled per-batch 2-D transposes (XLU path; safest Mosaic lowering).
        for i in range(b_tile):
            o_ref[i] = x_ref[i].T

    call = pl.pallas_call(
        kernel,
        out_shape=jax.ShapeDtypeStruct((nb, b, a), dtype),
        grid=grid,
        in_specs=[pl.BlockSpec((b_tile, ta, tb), lambda ib, ia, jb: (ib, ia, jb))],
        out_specs=pl.BlockSpec((b_tile, tb, ta), lambda ib, ia, jb: (ib, jb, ia)),
        compiler_params=pltpu.CompilerParams(
            dimension_semantics=("parallel", "parallel", "parallel"),
            vmem_limit_bytes=int(vmem_limit)),
    )
    return jax.jit(call)


@functools.lru_cache(maxsize=None)
def _build_flat(nb, a, b, dtype_name, b_tile, tb, vmem_limit):
    dtype = jnp.dtype(dtype_name)
    g_full, g_blk = b // _LANE, tb // _LANE
    grid = (nb // b_tile, _cdiv(b, tb))

    def kernel(x_ref, o_ref):
        for i in range(b_tile):
            # (A, TB) -T-> (TB, A) -reshape-> (TB/128, 128*A): row-major
            # flatten, so every store tile is a full multiple of 128 lanes.
            o_ref[i] = x_ref[i].T.reshape(g_blk, _LANE * a)

    call = pl.pallas_call(
        kernel,
        out_shape=jax.ShapeDtypeStruct((nb, g_full, _LANE * a), dtype),
        grid=grid,
        in_specs=[pl.BlockSpec((b_tile, a, tb), lambda ib, jb: (ib, 0, jb))],
        out_specs=pl.BlockSpec((b_tile, g_blk, _LANE * a), lambda ib, jb: (ib, jb, 0)),
        compiler_params=pltpu.CompilerParams(
            dimension_semantics=("parallel", "parallel"),
            vmem_limit_bytes=int(vmem_limit)),
    )
    return jax.jit(call)


@functools.lru_cache(maxsize=None)
def _flat_supported(nb, a, b, dtype_name, b_tile, tb, vmem_limit):
    """One-time (per static shape) compile probe for the flat lane-dense kernel.

    Mosaic's support for the in-kernel (TB, A) -> (TB/128, 128*A) relayout is
    shape dependent; probing once at build time keeps the path selection
    static (jit-friendly, no per-call host sync) while preserving a safe
    fallback to the rowmajor kernel.
    """
    try:
        call = _build_flat(nb, a, b, dtype_name, b_tile, tb, vmem_limit)
        call.lower(jax.ShapeDtypeStruct((nb, a, b), jnp.dtype(dtype_name))).compile()
        return True
    except Exception:  # any lowering / compile failure => use the fallback
        return False


# ----------------------------------------------------------------------------
# Batched 2-D transpose primitive and the permute wrapper
# ----------------------------------------------------------------------------
def _batched_transpose_2d(x3):
    """(NB, A, B) -> (NB, B, A), contiguous, via Pallas tiles."""
    nb, a, b = x3.shape
    itemsize = x3.dtype.itemsize
    dtype_name = jnp.dtype(x3.dtype).name

    # Lane-dense flat-output variant: best when the output minor dim (A) is
    # small / not 128-aligned (avoids masked vst + strided writeback DMA).
    if a % _LANE != 0 and a < _LANE and b % _LANE == 0:
        plan = _plan_flat(nb, a, b, itemsize)
        if plan is not None:
            b_tile, tb, vmem_limit = plan
            if _flat_supported(nb, a, b, dtype_name, b_tile, tb, vmem_limit):
                out = _build_flat(nb, a, b, dtype_name, b_tile, tb, vmem_limit)(x3)
                return out.reshape(nb, b, a)  # free: row-major layouts agree

    b_tile, ta, tb, vmem_limit = _plan_rowmajor(nb, a, b, itemsize)
    return _build_rowmajor(nb, a, b, dtype_name, b_tile, ta, tb, vmem_limit)(x3)


# Batch-first permutations that need two primitive passes.
_COMPOSED = {
    (0, 2, 1, 3): ((0, 2, 3, 1), (0, 1, 3, 2)),
    (0, 3, 2, 1): ((0, 3, 1, 2), (0, 1, 3, 2)),
}


def permute_layer(x, dims=(0, 2, 3, 1), *, min_pallas_bytes=_TINY_BYTES):
    """Pallas TPU equivalent of doctr PermuteLayer: x.permute(dims).contiguous()."""
    dims = tuple(int(d) for d in dims)
    assert x.ndim == 4 and sorted(dims) == [0, 1, 2, 3], "PermuteLayer expects 4-D input"

    if dims == (0, 1, 2, 3):
        return x  # identity permute; already contiguous

    total_bytes = x.size * x.dtype.itemsize
    if dims[0] != 0 or total_bytes < min_pallas_bytes:
        # Tiny tensors: pallas_call launch/grid overhead dominates; XLA wins.
        # TODO(synk): permutations that move the batch axis also use XLA transpose.
        return jnp.transpose(x, dims)

    if dims in _COMPOSED:
        # TODO(synk): two-pass composition doubles HBM traffic vs a fused kernel.
        p1, p2 = _COMPOSED[dims]
        y = permute_layer(x, p1, min_pallas_bytes=min_pallas_bytes)
        return permute_layer(y, p2, min_pallas_bytes=min_pallas_bytes)

    n, s1, s2, s3 = x.shape
    if dims == (0, 2, 3, 1):      # NCHW -> NHWC (the module's default)
        out = _batched_transpose_2d(x.reshape(n, s1, s2 * s3))
        return out.reshape(n, s2, s3, s1)
    if dims == (0, 3, 1, 2):      # NHWC -> NCHW
        # TODO(synk): a lane-dense *input* variant (mirror of the flat-output
        # trick) would speed this direction up further when s3 is small.
        out = _batched_transpose_2d(x.reshape(n, s1 * s2, s3))
        return out.reshape(n, s3, s1, s2)
    if dims == (0, 1, 3, 2):      # transpose of the last two dims
        out = _batched_transpose_2d(x.reshape(n * s1, s2, s3))
        return out.reshape(n, s1, s3, s2)
    return jnp.transpose(x, dims)  # unreachable for valid 4-D batch-first dims


if __name__ == "__main__":
    key = jax.random.PRNGKey(0)

    def check(x, dims=(0, 2, 3, 1), **kw):
        out = jax.block_until_ready(permute_layer(x, dims, **kw))
        ref = jnp.transpose(x, dims)
        assert out.shape == ref.shape, (out.shape, ref.shape)
        assert jnp.array_equal(out, ref), ("permute mismatch", x.shape, dims)
        return out

    # 1) Module-default shape/dims (tiny -> XLA short-circuit, exact semantics).
    x = jax.random.normal(key, (2, 4, 16, 16), dtype=jnp.float32)
    check(x)

    # 2) Same shape forced through the Pallas path (flat lane-dense kernel or
    #    its rowmajor fallback) to validate the kernels on the canonical shape.
    check(x, min_pallas_bytes=0)

    # 3) Larger NCHW->NHWC with small C: flat lane-dense output path,
    #    batch-parallel grid (>=2 steps for v7x's two TensorCores).
    x2 = jax.random.normal(key, (2, 64, 64, 64), dtype=jnp.float32)
    check(x2)

    # 4) C % 128 == 0: rowmajor path (already lane-dense), split HW grid.
    x3 = jax.random.normal(key, (1, 128, 32, 64), dtype=jnp.float32)
    check(x3)

    # 5) HW not a multiple of 128 and per-batch slab above the VMEM step
    #    budget: cdiv grid with a partial trailing block.
    x4 = jax.random.normal(key, (2, 160, 72, 100), dtype=jnp.float32)
    check(x4)

    # 6) Non-default batch-first permutation (NHWC -> NCHW primitive).
    check(x, dims=(0, 3, 1, 2), min_pallas_bytes=0)

    # 7) Composed permutation (two primitive passes).
    check(x, dims=(0, 2, 1, 3), min_pallas_bytes=0)

    print("KERNEL_OK")
</pallas_src>

<mosaic_0001>
module attributes {stable_mosaic.version = 11 : i64} {
  func.func @kernel(%arg0: i32, %arg1: i32, %arg2: i32, %arg3: memref<2x4x256xf32, #tpu.memory_space<vmem>>, %arg4: memref<2x256x4xf32, #tpu.memory_space<vmem>>) attributes {dimension_semantics = [#tpu.dimension_semantics<parallel>, #tpu.dimension_semantics<parallel>, #tpu.dimension_semantics<parallel>], iteration_bounds = array<i64: 1, 1, 1>, scalar_prefetch = 0 : i64, scratch_operands = 0 : i64, tpu.core_type = #tpu.core_type<tc>, window_params = [{transform_indices = @transform_0, window_bounds = array<i64: 2, 4, 256>}, {transform_indices = @transform_1, window_bounds = array<i64: 2, 256, 4>}]} {
    %c0 = arith.constant 0 : index
    %c0_0 = arith.constant 0 : index
    %c0_1 = arith.constant 0 : index
    %0 = vector.load %arg3[%c0, %c0_0, %c0_1] : memref<2x4x256xf32, #tpu.memory_space<vmem>>, vector<1x4x256xf32>
    %1 = vector.shape_cast %0 : vector<1x4x256xf32> to vector<4x256xf32>
    %2 = tpu.transpose %1, [1, 0] : vector<4x256xf32> -> vector<256x4xf32>
    %c0_2 = arith.constant 0 : index
    %c0_3 = arith.constant 0 : index
    %c0_4 = arith.constant 0 : index
    %3 = vector.load %arg4[%c0_2, %c0_3, %c0_4] : memref<2x256x4xf32, #tpu.memory_space<vmem>>, vector<1x256x4xf32>
    %4 = vector.shape_cast %3 : vector<1x256x4xf32> to vector<256x4xf32>
    %5 = vector.shape_cast %2 : vector<256x4xf32> to vector<1x256x4xf32>
    tpu.vector_store %arg4[%c0_2, %c0_3, %c0_4], %5 {strides = array<i32>} : memref<2x256x4xf32, #tpu.memory_space<vmem>>, vector<1x256x4xf32>,
    %c1 = arith.constant 1 : index
    %c0_5 = arith.constant 0 : index
    %c0_6 = arith.constant 0 : index
    %6 = vector.load %arg3[%c1, %c0_5, %c0_6] : memref<2x4x256xf32, #tpu.memory_space<vmem>>, vector<1x4x256xf32>
    %7 = vector.shape_cast %6 : vector<1x4x256xf32> to vector<4x256xf32>
    %8 = tpu.transpose %7, [1, 0] : vector<4x256xf32> -> vector<256x4xf32>
    %c1_7 = arith.constant 1 : index
    %c0_8 = arith.constant 0 : index
    %c0_9 = arith.constant 0 : index
    %9 = vector.load %arg4[%c1_7, %c0_8, %c0_9] : memref<2x256x4xf32, #tpu.memory_space<vmem>>, vector<1x256x4xf32>
    %10 = vector.shape_cast %9 : vector<1x256x4xf32> to vector<256x4xf32>
    %11 = vector.shape_cast %8 : vector<256x4xf32> to vector<1x256x4xf32>
    tpu.vector_store %arg4[%c1_7, %c0_8, %c0_9], %11 {strides = array<i32>} : memref<2x256x4xf32, #tpu.memory_space<vmem>>, vector<1x256x4xf32>,
    return
  }
  func.func @transform_0(%arg0: i32, %arg1: i32, %arg2: i32) -> (i32, i32, i32) {
    %c0_i32 = arith.constant 0 : i32
    return %arg0, %arg1, %arg2 : i32, i32, i32
  }
  func.func @transform_1(%arg0: i32, %arg1: i32, %arg2: i32) -> (i32, i32, i32) {
    %c0_i32 = arith.constant 0 : i32
    return %arg0, %arg2, %arg1 : i32, i32, i32
  }
}

</mosaic_0001>

<llo_original>
// kernel: tpu_custom_call.1
$region0: #{tpu_custom_call.1}
  #allocation0 [shape = 'u32[]', space=smem, size = 0x4, offset = 0x4, fixed_abs, tag = 'smem constant byte address 0x4 - core index']
  #allocation1 [shape = 'u32[144,128]{1,0:T(1,128)}', space=vmem, size = 0x12000, scoped, tag = 'internal scratch']
  %s0 = inlined_call_operand.hbm [shape: f32[2,4,256], index: 0, kind: input, shape index: {}]
  %s1 = inlined_call_operand.vmem [shape: f32[2,256,4], index: 1, kind: output, shape index: {}]
  %s2 = sld [smem:[#allocation0]]
  $region18: #{tpu_custom_call.1} parent=0
    _
  %s4 = ssub.s32 1, %s2
  %s5 = scalar_select 0, %s4, %s2
  $region1: #{tpu_custom_call.1} parent=0
    #allocation2 [shape = 'u8[8192]{0}', space=vmem, size = 0x2000, scoped, tag = 'input window, operand 0, single buffered']
    #allocation3 [shape = 's32[1]{0}', space=sflag, size = 0x4, scoped, tag = 'scoped memory for tpu_custom_call.1']
    %6 = vsyncpa [#allocation3], 0
    // Predicated region
    $region2: #{tpu_custom_call.1} parent=1 // pred_check
      _
    $region3: #{tpu_custom_call.1} parent=1 // pred_check_branch
      %8 = sbr.rel (0) target = $region5
    $region4: #{tpu_custom_call.1} parent=1 // pred_region
      %s10 = ssub.s32 256, 256
      %11 = vsyncadd [#allocation3], %s10
      %s12 = sshll.u32 [#allocation2], 4
      %s13 = int_to_ptr.vmem [resolvable:$true] %s12
      %18 = dma.hbm_to_vmem [thread:$0]  %s0, 256, %s13, [#allocation3], 128, 128, 8
    $region5: #{tpu_custom_call.1} parent=1 // pred_fallthru
      _
    // Predicated region
    $region6: #{tpu_custom_call.1} parent=1 // pred_check
      _
    $region7: #{tpu_custom_call.1} parent=1 // pred_check_branch
      %20 = sbr.rel (0) target = $region9
    $region8: #{tpu_custom_call.1} parent=1 // pred_region
      %21 = dma.done [#allocation3], 256
    $region9: #{tpu_custom_call.1} parent=1 // pred_fallthru
      _
    %v22 = vld [vmem:[#allocation2] sm:$0xff]
    %v24 = vcombine.high %v22, %v22
    %26 = vxpose.xlu0.b32.start [1/16] %v22, 128
    %27 = vxpose.xlu0.b32.cont [2/16] 0.0, 128
    %28 = vxpose.xlu0.b32.cont [3/16] 0.0, 128
    %29 = vxpose.xlu0.b32.cont [4/16] 0.0, 128
    %30 = vxpose.xlu0.b32.cont [5/16] 0.0, 128
    %31 = vxpose.xlu0.b32.cont [6/16] 0.0, 128
    %32 = vxpose.xlu0.b32.cont [7/16] 0.0, 128
    %33 = vxpose.xlu0.b32.cont [8/16] 0.0, 128
    %34 = vxpose.xlu0.b32.cont [9/16] 0.0, 128
    %35 = vxpose.xlu0.b32.cont [10/16] 0.0, 128
    %36 = vxpose.xlu0.b32.cont [11/16] 0.0, 128
    %37 = vxpose.xlu0.b32.cont [12/16] 0.0, 128
    %38 = vxpose.xlu0.b32.cont [13/16] 0.0, 128
    %39 = vxpose.xlu0.b32.cont [14/16] 0.0, 128
    %40 = vxpose.xlu0.b32.cont [15/16] 0.0, 128
    %41 = vxpose.xlu0.b32.end [16/16] 0.0, 128
    %v42 = vpop.trf.xlu0
    %v43 = vpop.trf.xlu0
    %v44 = vpop.trf.xlu0
    %v45 = vpop.trf.xlu0
    %v46 = vpop.trf.xlu0
    %v47 = vpop.trf.xlu0
    %v48 = vpop.trf.xlu0
    %v49 = vpop.trf.xlu0
    %v50 = vpop.trf.xlu0
    %v51 = vpop.trf.xlu0
    %v52 = vpop.trf.xlu0
    %v53 = vpop.trf.xlu0
    %v54 = vpop.trf.xlu0
    %v55 = vpop.trf.xlu0
    %v56 = vpop.trf.xlu0
    %v57 = vpop.trf.xlu0
    %58 = vxpose.xlu0.b32.start [1/16] %v24, 128
    %59 = vxpose.xlu0.b32.cont [2/16] 0.0, 128
    %60 = vxpose.xlu0.b32.cont [3/16] 0.0, 128
    %61 = vxpose.xlu0.b32.cont [4/16] 0.0, 128
    %62 = vxpose.xlu0.b32.cont [5/16] 0.0, 128
    %63 = vxpose.xlu0.b32.cont [6/16] 0.0, 128
    %64 = vxpose.xlu0.b32.cont [7/16] 0.0, 128
    %65 = vxpose.xlu0.b32.cont [8/16] 0.0, 128
    %66 = vxpose.xlu0.b32.cont [9/16] 0.0, 128
    %67 = vxpose.xlu0.b32.cont [10/16] 0.0, 128
    %68 = vxpose.xlu0.b32.cont [11/16] 0.0, 128
    %69 = vxpose.xlu0.b32.cont [12/16] 0.0, 128
    %70 = vxpose.xlu0.b32.cont [13/16] 0.0, 128
    %71 = vxpose.xlu0.b32.cont [14/16] 0.0, 128
    %72 = vxpose.xlu0.b32.cont [15/16] 0.0, 128
    %73 = vxpose.xlu0.b32.end [16/16] 0.0, 128
    %v74 = vpop.trf.xlu0
    %v75 = vpop.trf.xlu0
    %v76 = vpop.trf.xlu0
    %v77 = vpop.trf.xlu0
    %v78 = vpop.trf.xlu0
    %v79 = vpop.trf.xlu0
    %v80 = vpop.trf.xlu0
    %v81 = vpop.trf.xlu0
    %v82 = vpop.trf.xlu0
    %v83 = vpop.trf.xlu0
    %v84 = vpop.trf.xlu0
    %v85 = vpop.trf.xlu0
    %v86 = vpop.trf.xlu0
    %v87 = vpop.trf.xlu0
    %v88 = vpop.trf.xlu0
    %v89 = vpop.trf.xlu0
    %vm90 = vcmask 31744
    %91 = vst.msk [vmem:[%s1] sm:$0xff] %vm90, %v42
    %92 = vst.msk [vmem:[%s1 + $0x8] sm:$0xff] %vm90, %v43
    %93 = vst.msk [vmem:[%s1 + $0x10] sm:$0xff] %vm90, %v44
    %94 = vst.msk [vmem:[%s1 + $0x18] sm:$0xff] %vm90, %v45
    %95 = vst.msk [vmem:[%s1 + $0x20] sm:$0xff] %vm90, %v46
    %96 = vst.msk [vmem:[%s1 + $0x28] sm:$0xff] %vm90, %v47
    %97 = vst.msk [vmem:[%s1 + $0x30] sm:$0xff] %vm90, %v48
    %98 = vst.msk [vmem:[%s1 + $0x38] sm:$0xff] %vm90, %v49
    %99 = vst.msk [vmem:[%s1 + $0x40] sm:$0xff] %vm90, %v50
    %100 = vst.msk [vmem:[%s1 + $0x48] sm:$0xff] %vm90, %v51
    %101 = vst.msk [vmem:[%s1 + $0x50] sm:$0xff] %vm90, %v52
    %102 = vst.msk [vmem:[%s1 + $0x58] sm:$0xff] %vm90, %v53
    %103 = vst.msk [vmem:[%s1 + $0x60] sm:$0xff] %vm90, %v54
    %104 = vst.msk [vmem:[%s1 + $0x68] sm:$0xff] %vm90, %v55
    %105 = vst.msk [vmem:[%s1 + $0x70] sm:$0xff] %vm90, %v56
    %106 = vst.msk [vmem:[%s1 + $0x78] sm:$0xff] %vm90, %v57
    %107 = vst.msk [vmem:[%s1 + $0x80] sm:$0xff] %vm90, %v74
    %108 = vst.msk [vmem:[%s1 + $0x88] sm:$0xff] %vm90, %v75
    %109 = vst.msk [vmem:[%s1 + $0x90] sm:$0xff] %vm90, %v76
    %110 = vst.msk [vmem:[%s1 + $0x98] sm:$0xff] %vm90, %v77
    %111 = vst.msk [vmem:[%s1 + $0xa0] sm:$0xff] %vm90, %v78
    %112 = vst.msk [vmem:[%s1 + $0xa8] sm:$0xff] %vm90, %v79
    %113 = vst.msk [vmem:[%s1 + $0xb0] sm:$0xff] %vm90, %v80
    %114 = vst.msk [vmem:[%s1 + $0xb8] sm:$0xff] %vm90, %v81
    %115 = vst.msk [vmem:[%s1 + $0xc0] sm:$0xff] %vm90, %v82
    %116 = vst.msk [vmem:[%s1 + $0xc8] sm:$0xff] %vm90, %v83
    %117 = vst.msk [vmem:[%s1 + $0xd0] sm:$0xff] %vm90, %v84
    %118 = vst.msk [vmem:[%s1 + $0xd8] sm:$0xff] %vm90, %v85
    %119 = vst.msk [vmem:[%s1 + $0xe0] sm:$0xff] %vm90, %v86
    %120 = vst.msk [vmem:[%s1 + $0xe8] sm:$0xff] %vm90, %v87
    %121 = vst.msk [vmem:[%s1 + $0xf0] sm:$0xff] %vm90, %v88
    %122 = vst.msk [vmem:[%s1 + $0xf8] sm:$0xff] %vm90, %v89
    %s123 = scalar_lea.vmem [#allocation2], 8
    %v124 = vld [vmem:[%s123] sm:$0xff]
    %v126 = vcombine.high %v124, %v124
    %128 = vxpose.xlu0.b32.start [1/16] %v124, 128
    %129 = vxpose.xlu0.b32.cont [2/16] 0.0, 128
    %130 = vxpose.xlu0.b32.cont [3/16] 0.0, 128
    %131 = vxpose.xlu0.b32.cont [4/16] 0.0, 128
    %132 = vxpose.xlu0.b32.cont [5/16] 0.0, 128
    %133 = vxpose.xlu0.b32.cont [6/16] 0.0, 128
    %134 = vxpose.xlu0.b32.cont [7/16] 0.0, 128
    %135 = vxpose.xlu0.b32.cont [8/16] 0.0, 128
    %136 = vxpose.xlu0.b32.cont [9/16] 0.0, 128
    %137 = vxpose.xlu0.b32.cont [10/16] 0.0, 128
    %138 = vxpose.xlu0.b32.cont [11/16] 0.0, 128
    %139 = vxpose.xlu0.b32.cont [12/16] 0.0, 128
    %140 = vxpose.xlu0.b32.cont [13/16] 0.0, 128
    %141 = vxpose.xlu0.b32.cont [14/16] 0.0, 128
    %142 = vxpose.xlu0.b32.cont [15/16] 0.0, 128
    %143 = vxpose.xlu0.b32.end [16/16] 0.0, 128
    %v144 = vpop.trf.xlu0
    %v145 = vpop.trf.xlu0
    %v146 = vpop.trf.xlu0
    %v147 = vpop.trf.xlu0
    %v148 = vpop.trf.xlu0
    %v149 = vpop.trf.xlu0
    %v150 = vpop.trf.xlu0
    %v151 = vpop.trf.xlu0
    %v152 = vpop.trf.xlu0
    %v153 = vpop.trf.xlu0
    %v154 = vpop.trf.xlu0
    %v155 = vpop.trf.xlu0
    %v156 = vpop.trf.xlu0
    %v157 = vpop.trf.xlu0
    %v158 = vpop.trf.xlu0
    %v159 = vpop.trf.xlu0
    %160 = vxpose.xlu0.b32.start [1/16] %v126, 128
    %161 = vxpose.xlu0.b32.cont [2/16] 0.0, 128
    %162 = vxpose.xlu0.b32.cont [3/16] 0.0, 128
    %163 = vxpose.xlu0.b32.cont [4/16] 0.0, 128
    %164 = vxpose.xlu0.b32.cont [5/16] 0.0, 128
    %165 = vxpose.xlu0.b32.cont [6/16] 0.0, 128
    %166 = vxpose.xlu0.b32.cont [7/16] 0.0, 128
    %167 = vxpose.xlu0.b32.cont [8/16] 0.0, 128
    %168 = vxpose.xlu0.b32.cont [9/16] 0.0, 128
    %169 = vxpose.xlu0.b32.cont [10/16] 0.0, 128
    %170 = vxpose.xlu0.b32.cont [11/16] 0.0, 128
    %171 = vxpose.xlu0.b32.cont [12/16] 0.0, 128
    %172 = vxpose.xlu0.b32.cont [13/16] 0.0, 128
    %173 = vxpose.xlu0.b32.cont [14/16] 0.0, 128
    %174 = vxpose.xlu0.b32.cont [15/16] 0.0, 128
    %175 = vxpose.xlu0.b32.end [16/16] 0.0, 128
    %v176 = vpop.trf.xlu0
    %v177 = vpop.trf.xlu0
    %v178 = vpop.trf.xlu0
    %v179 = vpop.trf.xlu0
    %v180 = vpop.trf.xlu0
    %v181 = vpop.trf.xlu0
    %v182 = vpop.trf.xlu0
    %v183 = vpop.trf.xlu0
    %v184 = vpop.trf.xlu0
    %v185 = vpop.trf.xlu0
    %v186 = vpop.trf.xlu0
    %v187 = vpop.trf.xlu0
    %v188 = vpop.trf.xlu0
    %v189 = vpop.trf.xlu0
    %v190 = vpop.trf.xlu0
    %v191 = vpop.trf.xlu0
    %s192 = scalar_lea.vmem %s1, 256
    %193 = vst.msk [vmem:[%s192] sm:$0xff] %vm90, %v144
    %194 = vst.msk [vmem:[%s192 + $0x8] sm:$0xff] %vm90, %v145
    %195 = vst.msk [vmem:[%s192 + $0x10] sm:$0xff] %vm90, %v146
    %196 = vst.msk [vmem:[%s192 + $0x18] sm:$0xff] %vm90, %v147
    %197 = vst.msk [vmem:[%s192 + $0x20] sm:$0xff] %vm90, %v148
    %198 = vst.msk [vmem:[%s192 + $0x28] sm:$0xff] %vm90, %v149
    %199 = vst.msk [vmem:[%s192 + $0x30] sm:$0xff] %vm90, %v150
    %200 = vst.msk [vmem:[%s192 + $0x38] sm:$0xff] %vm90, %v151
    %201 = vst.msk [vmem:[%s192 + $0x40] sm:$0xff] %vm90, %v152
    %202 = vst.msk [vmem:[%s192 + $0x48] sm:$0xff] %vm90, %v153
    %203 = vst.msk [vmem:[%s192 + $0x50] sm:$0xff] %vm90, %v154
    %204 = vst.msk [vmem:[%s192 + $0x58] sm:$0xff] %vm90, %v155
    %205 = vst.msk [vmem:[%s192 + $0x60] sm:$0xff] %vm90, %v156
    %206 = vst.msk [vmem:[%s192 + $0x68] sm:$0xff] %vm90, %v157
    %207 = vst.msk [vmem:[%s192 + $0x70] sm:$0xff] %vm90, %v158
    %208 = vst.msk [vmem:[%s192 + $0x78] sm:$0xff] %vm90, %v159
    %209 = vst.msk [vmem:[%s192 + $0x80] sm:$0xff] %vm90, %v176
    %210 = vst.msk [vmem:[%s192 + $0x88] sm:$0xff] %vm90, %v177
    %211 = vst.msk [vmem:[%s192 + $0x90] sm:$0xff] %vm90, %v178
    %212 = vst.msk [vmem:[%s192 + $0x98] sm:$0xff] %vm90, %v179
    %213 = vst.msk [vmem:[%s192 + $0xa0] sm:$0xff] %vm90, %v180
    %214 = vst.msk [vmem:[%s192 + $0xa8] sm:$0xff] %vm90, %v181
    %215 = vst.msk [vmem:[%s192 + $0xb0] sm:$0xff] %vm90, %v182
    %216 = vst.msk [vmem:[%s192 + $0xb8] sm:$0xff] %vm90, %v183
    %217 = vst.msk [vmem:[%s192 + $0xc0] sm:$0xff] %vm90, %v184
    %218 = vst.msk [vmem:[%s192 + $0xc8] sm:$0xff] %vm90, %v185
    %219 = vst.msk [vmem:[%s192 + $0xd0] sm:$0xff] %vm90, %v186
    %220 = vst.msk [vmem:[%s192 + $0xd8] sm:$0xff] %vm90, %v187
    %221 = vst.msk [vmem:[%s192 + $0xe0] sm:$0xff] %vm90, %v188
    %222 = vst.msk [vmem:[%s192 + $0xe8] sm:$0xff] %vm90, %v189
    %223 = vst.msk [vmem:[%s192 + $0xf0] sm:$0xff] %vm90, %v190
    %224 = vst.msk [vmem:[%s192 + $0xf8] sm:$0xff] %vm90, %v191
    // Predicated region
    $region10: #{tpu_custom_call.1} parent=1 // pred_check
      _
    $region11: #{tpu_custom_call.1} parent=1 // pred_check_branch
      %226 = sbr.rel (0) target = $region13
    $region12: #{tpu_custom_call.1} parent=1 // pred_region
      _
    $region13: #{tpu_custom_call.1} parent=1 // pred_fallthru
      _
    // Predicated region
    $region14: #{tpu_custom_call.1} parent=1 // pred_check
      _
    $region15: #{tpu_custom_call.1} parent=1 // pred_check_branch
      %228 = sbr.rel (0) target = $region17
    $region16: #{tpu_custom_call.1} parent=1 // pred_region
      _
    $region17: #{tpu_custom_call.1} parent=1 // pred_fallthru
      _
    %229 = vsyncpa [#allocation3], 1

</llo_original>
